<compile_context>
chip_gen: v7x
topology: tpu7x:2x2x1
jax: 0.10.0
libtpu: 0.0.40
codegen_flags: <defaults>
</compile_context>

<pallas_src>
import jax
import jax.numpy as jnp
from jax.experimental import pallas as pl
from jax.experimental.pallas import tpu as pltpu


def _pos_encoding_kernel(x_ref, pos_ref, o_ref):
    # x_ref: (Bb, Rt, L), pos_ref: (Rt, L), o_ref: (Bb, Rt, L)
    # Single VPU add; the (Rt, L) table block broadcasts over the batch-block dim.
    o_ref[...] = x_ref[...] + pos_ref[...]


def positional_encoding(x, pos_embed_table, *, target_block_bytes=2 * 1024 * 1024):
    """out = x + pos_embed_table[:S]  (broadcast over batch).

    x:               (B, S, E)
    pos_embed_table: (max_len, E), S <= max_len
    """
    B, S, E = x.shape
    max_len, E2 = pos_embed_table.shape
    assert E == E2 and S <= max_len

    # Positions are arange(S): the "gather" is a contiguous slice of the first
    # S rows -- done once here so the kernel never sees the max_len-row table.
    pos = pos_embed_table[:S]                                    # (S, E)

    # ---- lane-dense 2-D view: per-batch (rows R) x (lanes L) ----------------
    if E % 128 == 0:
        R, L = S, E                       # already lane-dense
    elif (S * E) % 128 == 0:
        R, L = (S * E) // 128, 128        # flatten (S, E) -> (R, 128)
    else:
        R, L = S, E                       # fallback: correct, just not lane-dense

    x2 = x.reshape(B, R, L)
    pos2 = pos.reshape(R, L)

    itemsize = jnp.dtype(x.dtype).itemsize
    row_bytes = L * itemsize

    # ---- tile sizes: keep each x/out block around target_block_bytes --------
    if R * row_bytes <= target_block_bytes:
        Rt = R
        Bb = int(min(B, max(1, target_block_bytes // (R * row_bytes))))
    else:
        Bb = 1
        Rt = (target_block_bytes // row_bytes) // 8 * 8
        Rt = int(min(max(Rt, 8), R))
        if Rt != R and Rt % 8 != 0:       # (8, 128) rule: multiple of 8 or full dim
            Rt = R

    grid = (pl.cdiv(B, Bb), pl.cdiv(R, Rt))

    out2 = pl.pallas_call(
        _pos_encoding_kernel,
        out_shape=jax.ShapeDtypeStruct((B, R, L), x.dtype),
        grid_spec=pltpu.PrefetchScalarGridSpec(
            num_scalar_prefetch=0,
            grid=grid,
            in_specs=[
                pl.BlockSpec((Bb, Rt, L), lambda b, r: (b, r, 0)),
                pl.BlockSpec((Rt, L), lambda b, r: (r, 0)),
            ],
            out_specs=pl.BlockSpec((Bb, Rt, L), lambda b, r: (b, r, 0)),
        ),
        compiler_params=pltpu.CompilerParams(
            dimension_semantics=("parallel", "parallel"),
        ),
    )(x2, pos2)

    return out2.reshape(B, S, E)


if __name__ == "__main__":
    key = jax.random.PRNGKey(0)
    kx, kw, kx2, kw2 = jax.random.split(key, 4)

    # --- primary small case matching the module: batch=2, seq=8, emb=32 ------
    B, S, E, MAX_LEN = 2, 8, 32, 1000
    x = jax.random.normal(kx, (B, S, E), dtype=jnp.float32)
    table = jax.random.normal(kw, (MAX_LEN, E), dtype=jnp.float32)

    out = jax.block_until_ready(positional_encoding(x, table))
    ref = x + table[:S][None, :, :]
    assert out.shape == (B, S, E)
    assert jnp.allclose(out, ref, atol=1e-6), "mismatch vs reference (small case)"

    # --- secondary check: lane-native E, forced multi-step parallel grid -----
    B2, S2, E2, MAX_LEN2 = 2, 128, 256, 512
    x_b = jax.random.normal(kx2, (B2, S2, E2), dtype=jnp.float32)
    table_b = jax.random.normal(kw2, (MAX_LEN2, E2), dtype=jnp.float32)
    out_b = jax.block_until_ready(
        positional_encoding(x_b, table_b, target_block_bytes=4096)
    )
    ref_b = x_b + table_b[:S2][None, :, :]
    assert jnp.allclose(out_b, ref_b, atol=1e-6), "mismatch vs reference (tiled case)"

    print("KERNEL_OK")
</pallas_src>

<mosaic_0001>
module attributes {stable_mosaic.version = 11 : i64} {
  func.func @_pos_encoding_kernel(%arg0: i32, %arg1: i32, %arg2: memref<2x2x128xf32, #tpu.memory_space<vmem>>, %arg3: memref<2x128xf32, #tpu.memory_space<vmem>>, %arg4: memref<2x2x128xf32, #tpu.memory_space<vmem>>) attributes {dimension_semantics = [#tpu.dimension_semantics<parallel>, #tpu.dimension_semantics<parallel>], iteration_bounds = array<i64: 1, 1>, scalar_prefetch = 0 : i64, scratch_operands = 0 : i64, tpu.core_type = #tpu.core_type<tc>, window_params = [{transform_indices = @transform_0, window_bounds = array<i64: 2, 2, 128>}, {transform_indices = @transform_1, window_bounds = array<i64: 2, 128>}, {transform_indices = @transform_2, window_bounds = array<i64: 2, 2, 128>}]} {
    %c0 = arith.constant 0 : index
    %c0_0 = arith.constant 0 : index
    %c0_1 = arith.constant 0 : index
    %0 = vector.load %arg2[%c0, %c0_0, %c0_1] : memref<2x2x128xf32, #tpu.memory_space<vmem>>, vector<2x2x128xf32>
    %c0_2 = arith.constant 0 : index
    %c0_3 = arith.constant 0 : index
    %1 = vector.load %arg3[%c0_2, %c0_3] : memref<2x128xf32, #tpu.memory_space<vmem>>, vector<2x128xf32>
    %2 = vector.shape_cast %1 : vector<2x128xf32> to vector<1x2x128xf32>
    %3 = vector.broadcast %2 : vector<1x2x128xf32> to vector<2x2x128xf32>
    %4 = arith.addf %0, %3 : vector<2x2x128xf32>
    %c0_4 = arith.constant 0 : index
    %c0_5 = arith.constant 0 : index
    %c0_6 = arith.constant 0 : index
    %5 = vector.load %arg4[%c0_4, %c0_5, %c0_6] : memref<2x2x128xf32, #tpu.memory_space<vmem>>, vector<2x2x128xf32>
    tpu.vector_store %arg4[%c0_4, %c0_5, %c0_6], %4 {strides = array<i32>} : memref<2x2x128xf32, #tpu.memory_space<vmem>>, vector<2x2x128xf32>,
    return
  }
  func.func @transform_0(%arg0: i32, %arg1: i32) -> (i32, i32, i32) {
    %c0_i32 = arith.constant 0 : i32
    %c0_i32_0 = arith.constant 0 : i32
    return %arg0, %arg1, %c0_i32 : i32, i32, i32
  }
  func.func @transform_1(%arg0: i32, %arg1: i32) -> (i32, i32) {
    %c0_i32 = arith.constant 0 : i32
    %c0_i32_0 = arith.constant 0 : i32
    return %arg1, %c0_i32 : i32, i32
  }
  func.func @transform_2(%arg0: i32, %arg1: i32) -> (i32, i32, i32) {
    %c0_i32 = arith.constant 0 : i32
    %c0_i32_0 = arith.constant 0 : i32
    return %arg0, %arg1, %c0_i32 : i32, i32, i32
  }
}

</mosaic_0001>

<llo_original>
// kernel: tpu_custom_call.1
$region0: #{tpu_custom_call.1}
  #allocation0 [shape = 'u32[]', space=smem, size = 0x4, offset = 0x4, fixed_abs, tag = 'smem constant byte address 0x4 - core index']
  #allocation1 [shape = 'u32[144,128]{1,0:T(1,128)}', space=vmem, size = 0x12000, scoped, tag = 'internal scratch']
  %s0 = inlined_call_operand.hbm [shape: f32[2,2,128], index: 0, kind: input, shape index: {}]
  %s1 = inlined_call_operand.vmem [shape: f32[2,128], index: 1, kind: input, shape index: {}]
  %s2 = inlined_call_operand.hbm [shape: f32[2,2,128], index: 2, kind: output, shape index: {}]
  %s3 = sld [smem:[#allocation0]]
  $region22: #{tpu_custom_call.1} parent=0
    _
  %s5 = ssub.s32 1, %s3
  %s6 = scalar_select 0, %s5, %s3
  $region1: #{tpu_custom_call.1} parent=0
    #allocation2 [shape = 'u8[2048]{0}', space=vmem, size = 0x800, scoped, tag = 'input window, operand 0, single buffered']
    #allocation3 [shape = 's32[1]{0}', space=sflag, size = 0x4, scoped, tag = 'scoped memory for tpu_custom_call.1']
    #allocation4 [shape = 's32[1]{0}', space=sflag, size = 0x4, scoped, tag = 'scoped memory for tpu_custom_call.1']
    #allocation5 [shape = 'u8[2048]{0}', space=vmem, size = 0x800, scoped, tag = 'output window, operand 0, single buffered']
    %7 = vsyncpa [#allocation3], 0
    %8 = vsyncpa [#allocation4], 0
    // Predicated region
    $region2: #{tpu_custom_call.1} parent=1 // pred_check
      _
    $region3: #{tpu_custom_call.1} parent=1 // pred_check_branch
      %10 = sbr.rel (0) target = $region5
    $region4: #{tpu_custom_call.1} parent=1 // pred_region
      %s12 = ssub.s32 64, 64
      %13 = vsyncadd [#allocation3], %s12
      %s14 = sshll.u32 [#allocation2], 4
      %s15 = int_to_ptr.vmem [resolvable:$true] %s14
      %20 = dma.hbm_to_vmem [thread:$0]  %s0, 64, %s15, [#allocation3], 32, 32, 2
    $region5: #{tpu_custom_call.1} parent=1 // pred_fallthru
      _
    // Predicated region
    $region6: #{tpu_custom_call.1} parent=1 // pred_check
      _
    $region7: #{tpu_custom_call.1} parent=1 // pred_check_branch
      %22 = sbr.rel (0) target = $region9
    $region8: #{tpu_custom_call.1} parent=1 // pred_region
      _
    $region9: #{tpu_custom_call.1} parent=1 // pred_fallthru
      _
    // Predicated region
    $region10: #{tpu_custom_call.1} parent=1 // pred_check
      _
    $region11: #{tpu_custom_call.1} parent=1 // pred_check_branch
      %24 = sbr.rel (0) target = $region13
    $region12: #{tpu_custom_call.1} parent=1 // pred_region
      %25 = dma.done [#allocation3], 64
    $region13: #{tpu_custom_call.1} parent=1 // pred_fallthru
      _
    %v26 = vld [vmem:[#allocation2] sm:$0x3]
    %v27 = vld [vmem:[#allocation2 + $0x2] sm:$0x3]
    %v28 = vld [vmem:[%s1] sm:$0x3]
    %v29 = vadd.f32 %v26, %v28
    %v30 = vadd.f32 %v27, %v28
    %31 = vst [vmem:[#allocation5] sm:$0x3] %v29
    %32 = vst [vmem:[#allocation5 + $0x2] sm:$0x3] %v30
    // Predicated region
    $region14: #{tpu_custom_call.1} parent=1 // pred_check
      _
    $region15: #{tpu_custom_call.1} parent=1 // pred_check_branch
      %34 = sbr.rel (0) target = $region17
    $region16: #{tpu_custom_call.1} parent=1 // pred_region
      %s36 = ssub.s32 64, 64
      %37 = vsyncadd [#allocation4], %s36
      %s38 = sshll.u32 [#allocation5], 4
      %s39 = int_to_ptr.vmem [resolvable:$true] %s38
      %44 = dma.vmem_to_hbm [thread:$0]  %s39, 64, %s2, [#allocation4], 32, 32, 2
    $region17: #{tpu_custom_call.1} parent=1 // pred_fallthru
      _
    // Predicated region
    $region18: #{tpu_custom_call.1} parent=1 // pred_check
      _
    $region19: #{tpu_custom_call.1} parent=1 // pred_check_branch
      %46 = sbr.rel (0) target = $region21
    $region20: #{tpu_custom_call.1} parent=1 // pred_region
      %47 = dma.done [#allocation4], 64
    $region21: #{tpu_custom_call.1} parent=1 // pred_fallthru
      _
    %48 = vsyncpa [#allocation3], 1
    %49 = vsyncpa [#allocation4], 1

</llo_original>
